<compile_context>
chip_gen: v5e
topology: v5e:2x2
jax: 0.10.0
libtpu: 0.0.40
codegen_flags: <defaults>
</compile_context>

<pallas_src>
import functools

import jax
import jax.numpy as jnp
from jax import lax
from jax.experimental import pallas as pl
from jax.experimental.pallas import tpu as pltpu


def _round_up(x, m):
    return (x + m - 1) // m * m


def _sublane_multiple(dtype):
    return {4: 8, 2: 16, 1: 32}.get(jnp.dtype(dtype).itemsize, 8)


def _neg_fill(dtype):
    dtype = jnp.dtype(dtype)
    if jnp.issubdtype(dtype, jnp.floating):
        return float(jnp.finfo(dtype).min)
    return int(jnp.iinfo(dtype).min)


# ---------------------------------------------------------------------------
# Kernel bodies
# ---------------------------------------------------------------------------

def _avgmax_rowtile_kernel(x_ref, avg_ref, max_ref, *, inv_cols):
    """Full reduction width per block: one (TR, H*W) tile -> (TR, 1) avg & max."""
    x = x_ref[...]                                                 # (TR, cols)
    s = jnp.sum(x.astype(jnp.float32), axis=-1, keepdims=True)     # f32 accumulation
    m = jnp.max(x, axis=-1, keepdims=True)                         # exact in input dtype
    avg_ref[...] = (s * inv_cols).astype(avg_ref.dtype)
    max_ref[...] = m.astype(max_ref.dtype)


def _avgmax_coltile_kernel(x_ref, avg_ref, max_ref, sum_acc, max_acc, *,
                           inv_cols, cols, col_tile, neg_fill):
    """Reduction axis tiled: running sum/max accumulators, finalize on last tile."""
    k = pl.program_id(1)

    @pl.when(k == 0)
    def _init():
        sum_acc[...] = jnp.zeros_like(sum_acc)
        max_acc[...] = jnp.full_like(max_acc, neg_fill)

    x = x_ref[...]                                                 # (TR, TC)
    col_idx = k * col_tile + lax.broadcasted_iota(jnp.int32, x.shape, 1)
    valid = col_idx < cols                                         # mask padded tail tile
    sum_acc[...] += jnp.sum(jnp.where(valid, x, 0).astype(jnp.float32),
                            axis=-1, keepdims=True)
    max_acc[...] = jnp.maximum(
        max_acc[...],
        jnp.max(jnp.where(valid, x, neg_fill), axis=-1, keepdims=True))

    @pl.when(k == pl.num_programs(1) - 1)
    def _finalize():
        avg_ref[...] = (sum_acc[...] * inv_cols).astype(avg_ref.dtype)
        max_ref[...] = max_acc[...].astype(max_ref.dtype)


# ---------------------------------------------------------------------------
# Wrapper
# ---------------------------------------------------------------------------

def adaptive_catavgmax_pool2d_pallas(x, *, row_tile=None, col_tile=None,
                                     vmem_budget_bytes=4 * 1024 * 1024):
    """x: (N, C, H, W) -> (N, 2*C, 1, 1); channels = [avg || max]."""
    n, c, h, w = x.shape
    rows, cols = n * c, h * w
    x2d = x.reshape(rows, cols)

    itemsize = jnp.dtype(x.dtype).itemsize
    sublane = _sublane_multiple(x.dtype)
    inv_cols = 1.0 / float(cols)

    # ---- tile-size selection (budget against lane-padded VMEM footprint) ----
    if col_tile is None:
        padded_cols = _round_up(cols, 128)
        if padded_cols * itemsize * sublane > vmem_budget_bytes:
            col_tile = max(128,
                           (vmem_budget_bytes // (sublane * itemsize)) // 128 * 128)
        else:
            col_tile = cols                     # full reduction width in one block
    use_col_tiling = col_tile < cols

    if row_tile is None:
        width = _round_up(min(col_tile, cols), 128)
        row_tile = max(sublane,
                       (vmem_budget_bytes // (width * itemsize)) // sublane * sublane)
    row_tile = min(row_tile, _round_up(rows, sublane))
    if row_tile > rows:
        row_tile = rows                         # block == full (short) row axis

    out_shapes = (jax.ShapeDtypeStruct((rows, 1), x.dtype),
                  jax.ShapeDtypeStruct((rows, 1), x.dtype))
    cost = pl.CostEstimate(flops=2 * rows * cols, transcendentals=0,
                           bytes_accessed=rows * cols * itemsize + 2 * rows * itemsize)

    if not use_col_tiling:
        kernel = functools.partial(_avgmax_rowtile_kernel, inv_cols=inv_cols)
        avg2d, max2d = pl.pallas_call(
            kernel,
            out_shape=out_shapes,
            grid=(pl.cdiv(rows, row_tile),),
            in_specs=[pl.BlockSpec((row_tile, cols), lambda i: (i, 0))],
            out_specs=(pl.BlockSpec((row_tile, 1), lambda i: (i, 0)),
                       pl.BlockSpec((row_tile, 1), lambda i: (i, 0))),
            compiler_params=pltpu.CompilerParams(
                dimension_semantics=("parallel",)),
            cost_estimate=cost,
        )(x2d)
    else:
        kernel = functools.partial(
            _avgmax_coltile_kernel, inv_cols=inv_cols, cols=cols,
            col_tile=col_tile, neg_fill=_neg_fill(x.dtype))
        avg2d, max2d = pl.pallas_call(
            kernel,
            out_shape=out_shapes,
            grid=(pl.cdiv(rows, row_tile), pl.cdiv(cols, col_tile)),
            in_specs=[pl.BlockSpec((row_tile, col_tile), lambda i, k: (i, k))],
            out_specs=(pl.BlockSpec((row_tile, 1), lambda i, k: (i, 0)),
                       pl.BlockSpec((row_tile, 1), lambda i, k: (i, 0))),
            scratch_shapes=[pltpu.VMEM((row_tile, 1), jnp.float32),
                            pltpu.VMEM((row_tile, 1), x.dtype)],
            compiler_params=pltpu.CompilerParams(
                dimension_semantics=("parallel", "arbitrary")),
            cost_estimate=cost,
        )(x2d)

    avg = avg2d.reshape(n, c, 1, 1)
    mx = max2d.reshape(n, c, 1, 1)
    # Tiny (N, 2C, 1, 1) concat is left to XLA; all heavy lifting is in-kernel.
    return jnp.concatenate([avg, mx], axis=1)


class AdaptiveCatAvgMaxPool2d:
    """JAX/Pallas port of the PyTorch module (no learnable parameters)."""

    def __init__(self, output_size=1):
        # TODO(synk): only global pooling (output_size=1 / (1,1)) is implemented.
        if output_size not in (1, (1, 1)):
            raise NotImplementedError("Pallas kernel supports output_size=1 only")
        self.output_size = output_size

    def __call__(self, x):
        return adaptive_catavgmax_pool2d_pallas(x)


if __name__ == "__main__":
    key = jax.random.PRNGKey(0)
    k1, k2, k3 = jax.random.split(key, 3)

    def reference(x):
        xf = x.astype(jnp.float32)
        avg = jnp.mean(xf, axis=(2, 3), keepdims=True).astype(x.dtype)
        mx = jnp.max(x, axis=(2, 3), keepdims=True)
        return jnp.concatenate([avg, mx], axis=1)

    mod = AdaptiveCatAvgMaxPool2d(output_size=1)

    # 1) Small NCHW input -> row-tiled (full-width reduction) path.
    x1 = jax.random.normal(k1, (2, 4, 16, 16), dtype=jnp.float32)
    out1 = jax.block_until_ready(mod(x1))
    assert out1.shape == (2, 8, 1, 1), out1.shape
    assert jnp.allclose(out1, reference(x1), atol=1e-5, rtol=1e-5), "mismatch (path 1)"

    # 2) Force the column-tiled accumulator path, including a masked tail
    #    column tile (cols=400, col_tile=128 -> last tile has 16 valid lanes).
    x2 = jax.random.normal(k2, (1, 4, 20, 20), dtype=jnp.float32)
    out2 = jax.block_until_ready(adaptive_catavgmax_pool2d_pallas(x2, col_tile=128))
    assert out2.shape == (1, 8, 1, 1), out2.shape
    assert jnp.allclose(out2, reference(x2), atol=1e-5, rtol=1e-5), "mismatch (path 2)"

    # 3) bf16 input (sum accumulated in f32, max exact in bf16).
    x3 = jax.random.normal(k3, (2, 4, 16, 16), dtype=jnp.bfloat16)
    out3 = jax.block_until_ready(mod(x3))
    assert out3.shape == (2, 8, 1, 1), out3.shape
    assert jnp.allclose(out3.astype(jnp.float32), reference(x3).astype(jnp.float32),
                        atol=2e-2, rtol=2e-2), "mismatch (path 3, bf16)"

    print("KERNEL_OK")
</pallas_src>

<mosaic_0001>
module attributes {stable_mosaic.version = 11 : i64} {
  func.func @_avgmax_rowtile_kernel(%arg0: i32, %arg1: memref<8x256xf32, #tpu.memory_space<vmem>>, %arg2: memref<8x1xf32, #tpu.memory_space<vmem>>, %arg3: memref<8x1xf32, #tpu.memory_space<vmem>>) attributes {dimension_semantics = [#tpu.dimension_semantics<parallel>], iteration_bounds = array<i64: 1>, scalar_prefetch = 0 : i64, scratch_operands = 0 : i64, tpu.core_type = #tpu.core_type<tc>, window_params = [{transform_indices = @transform_0, window_bounds = array<i64: 8, 256>}, {transform_indices = @transform_1, window_bounds = array<i64: 8, 1>}, {transform_indices = @transform_2, window_bounds = array<i64: 8, 1>}]} {
    %c0 = arith.constant 0 : index
    %c0_0 = arith.constant 0 : index
    %0 = vector.load %arg1[%c0, %c0_0] : memref<8x256xf32, #tpu.memory_space<vmem>>, vector<8x256xf32>
    %cst = arith.constant dense<0.000000e+00> : vector<8xf32>
    %1 = vector.multi_reduction <add>, %0, %cst [1] : vector<8x256xf32> to vector<8xf32>
    %2 = vector.shape_cast %1 : vector<8xf32> to vector<8x1xf32>
    %cst_1 = arith.constant dense<0xFF800000> : vector<8xf32>
    %3 = vector.multi_reduction <maximumf>, %0, %cst_1 [1] : vector<8x256xf32> to vector<8xf32>
    %4 = vector.shape_cast %3 : vector<8xf32> to vector<8x1xf32>
    %cst_2 = arith.constant 3.906250e-03 : f32
    %5 = vector.broadcast %cst_2 : f32 to vector<8x1xf32>
    %6 = arith.mulf %2, %5 : vector<8x1xf32>
    %c0_3 = arith.constant 0 : index
    %c0_4 = arith.constant 0 : index
    %7 = vector.load %arg2[%c0_3, %c0_4] : memref<8x1xf32, #tpu.memory_space<vmem>>, vector<8x1xf32>
    tpu.vector_store %arg2[%c0_3, %c0_4], %6 {strides = array<i32>} : memref<8x1xf32, #tpu.memory_space<vmem>>, vector<8x1xf32>,
    %c0_5 = arith.constant 0 : index
    %c0_6 = arith.constant 0 : index
    %8 = vector.load %arg3[%c0_5, %c0_6] : memref<8x1xf32, #tpu.memory_space<vmem>>, vector<8x1xf32>
    tpu.vector_store %arg3[%c0_5, %c0_6], %4 {strides = array<i32>} : memref<8x1xf32, #tpu.memory_space<vmem>>, vector<8x1xf32>,
    return
  }
  func.func @transform_0(%arg0: i32) -> (i32, i32) {
    %c0_i32 = arith.constant 0 : i32
    %c0_i32_0 = arith.constant 0 : i32
    return %arg0, %c0_i32 : i32, i32
  }
  func.func @transform_1(%arg0: i32) -> (i32, i32) {
    %c0_i32 = arith.constant 0 : i32
    %c0_i32_0 = arith.constant 0 : i32
    return %arg0, %c0_i32 : i32, i32
  }
  func.func @transform_2(%arg0: i32) -> (i32, i32) {
    %c0_i32 = arith.constant 0 : i32
    %c0_i32_0 = arith.constant 0 : i32
    return %arg0, %c0_i32 : i32, i32
  }
}

</mosaic_0001>

<llo_original>
// kernel: tpu_custom_call.1
$region0: #{tpu_custom_call.1}
  #allocation0 [shape = 'u32[]', space=smem, size = 0x4, offset = 0x4, fixed_abs, tag = 'smem constant byte address 0x4 - core index']
  #allocation1 [shape = 'u32[72,128]{1,0:T(1,128)}', space=vmem, size = 0x9000, scoped, tag = 'internal scratch']
  %s0 = inlined_call_operand.hbm [shape: f32[8,256], index: 0, kind: input, shape index: {}]
  %s1 = inlined_call_operand.vmem [shape: f32[8,1], index: 1, kind: output, shape index: {0}]
  %s2 = inlined_call_operand.vmem [shape: f32[8,1], index: 2, kind: output, shape index: {1}]
  %3 = xla_tuple %s1, %s2
  %s4 = sld [smem:[#allocation0]]
  $region26: #{tpu_custom_call.1} parent=0
    _
  %s6 = ssub.s32 1, %s4
  %s7 = scalar_select 0, %s6, %s4
  $region1: #{tpu_custom_call.1} parent=0
    #allocation2 [shape = 'u8[8192]{0}', space=vmem, size = 0x2000, scoped, tag = 'input window, operand 0, single buffered']
    #allocation3 [shape = 's32[1]{0}', space=sflag, size = 0x4, scoped, tag = 'scoped memory for tpu_custom_call.1']
    %8 = vsyncpa [#allocation3], 0
    // Predicated region
    $region2: #{tpu_custom_call.1} parent=1 // pred_check
      _
    $region3: #{tpu_custom_call.1} parent=1 // pred_check_branch
      %10 = sbr.rel (0) target = $region5
    $region4: #{tpu_custom_call.1} parent=1 // pred_region
      %12 = vsyncadd [#allocation3], 0
      %s14 = sshll.u32 %s0, 4
      %s15 = int_to_ptr.hbm [resolvable:$true] %s14
      %s16 = sshll.u32 [#allocation2], 4
      %s17 = int_to_ptr.vmem [resolvable:$true] %s16
      %19 = dma.hbm_to_vmem [thread:$0]  %s15, 256, %s17, [#allocation3]
    $region5: #{tpu_custom_call.1} parent=1 // pred_fallthru
      _
    // Predicated region
    $region6: #{tpu_custom_call.1} parent=1 // pred_check
      _
    $region7: #{tpu_custom_call.1} parent=1 // pred_check_branch
      %21 = sbr.rel (0) target = $region9
    $region8: #{tpu_custom_call.1} parent=1 // pred_region
      %23 = dma.done [#allocation3], 256
    $region9: #{tpu_custom_call.1} parent=1 // pred_fallthru
      _
    %v24 = vld [vmem:[#allocation2] sm:$0xff]
    %v25 = vld [vmem:[#allocation2 + $0x8] sm:$0xff]
    %v26 = vadd.f32 %v24, %v25
    %27 = vadd.xlane.f32.xlu0 %v26
    %v28 = vpop.xlane.xlu0 %27
    %v29 = vmax.f32 %v24, %v25
    %30 = vmax.xlane.f32.xlu0 %v29
    %v31 = vpop.xlane.xlu0 %30
    %v32 = vmul.f32 %v28, 0.00390625
    %vm33 = vcmask 7168
    %34 = vst.msk [vmem:[%s1] sm:$0xff] %vm33, %v32
    %35 = vst.msk [vmem:[%s2] sm:$0xff] %vm33, %v31
    // Predicated region
    $region10: #{tpu_custom_call.1} parent=1 // pred_check
      _
    $region11: #{tpu_custom_call.1} parent=1 // pred_check_branch
      %37 = sbr.rel (0) target = $region13
    $region12: #{tpu_custom_call.1} parent=1 // pred_region
      _
    $region13: #{tpu_custom_call.1} parent=1 // pred_fallthru
      _
    // Predicated region
    $region14: #{tpu_custom_call.1} parent=1 // pred_check
      _
    $region15: #{tpu_custom_call.1} parent=1 // pred_check_branch
      %39 = sbr.rel (0) target = $region17
    $region16: #{tpu_custom_call.1} parent=1 // pred_region
      _
    $region17: #{tpu_custom_call.1} parent=1 // pred_fallthru
      _
    // Predicated region
    $region18: #{tpu_custom_call.1} parent=1 // pred_check
      _
    $region19: #{tpu_custom_call.1} parent=1 // pred_check_branch
      %41 = sbr.rel (0) target = $region21
    $region20: #{tpu_custom_call.1} parent=1 // pred_region
      _
    $region21: #{tpu_custom_call.1} parent=1 // pred_fallthru
      _
    // Predicated region
    $region22: #{tpu_custom_call.1} parent=1 // pred_check
      _
    $region23: #{tpu_custom_call.1} parent=1 // pred_check_branch
      %43 = sbr.rel (0) target = $region25
    $region24: #{tpu_custom_call.1} parent=1 // pred_region
      _
    $region25: #{tpu_custom_call.1} parent=1 // pred_fallthru
      _
    %44 = vsyncpa [#allocation3], 1

</llo_original>
